<compile_context>
chip_gen: v7x
topology: tpu7x:2x2x1
jax: 0.10.0
libtpu: 0.0.40
codegen_flags: <defaults>
</compile_context>

<pallas_src>
import functools
import math

import jax
import jax.numpy as jnp
from jax.experimental import pallas as pl
from jax.experimental.pallas import tpu as pltpu


# Stay comfortably under v7x's 64 MiB physical VMEM; plenty of headroom on
# v5e / v6e (128 MiB).
_VMEM_LIMIT = 48 * 1024 * 1024


def _pick_tile(dim, target, align):
    """Largest tile <= target that divides `dim` and is a multiple of `align`;
    falls back to the full dimension (always a legal Pallas block extent)."""
    if dim <= target:
        return dim
    t = (target // align) * align
    while t >= align:
        if dim % t == 0:
            return t
        t -= align
    return dim


def _gelu(y):
    # TODO(synk): HF BERT uses exact erf-GELU; tanh approximation used here
    # (EUP-friendly, numerically within ~1e-3).
    c = math.sqrt(2.0 / math.pi)
    return 0.5 * y * (1.0 + jnp.tanh(c * (y + 0.044715 * y * y * y)))


def _layer_norm(y, gamma, beta, eps):
    mean = jnp.mean(y, axis=-1, keepdims=True)
    yc = y - mean
    var = jnp.mean(yc * yc, axis=-1, keepdims=True)
    inv = jax.lax.rsqrt(var + eps)
    return yc * inv * gamma + beta


# ---------------------------------------------------------------------------
# Tiled linear: (M,K) @ (K,N) + b  (bf16 weights, f32 accumulation)
# ---------------------------------------------------------------------------
def _linear_kernel(x_ref, w_ref, b_ref, o_ref, acc_ref):
    @pl.when(pl.program_id(2) == 0)
    def _():
        acc_ref[...] = jnp.zeros_like(acc_ref)

    acc_ref[...] += jnp.dot(x_ref[...].astype(w_ref.dtype), w_ref[...],
                            preferred_element_type=jnp.float32)

    @pl.when(pl.program_id(2) == pl.num_programs(2) - 1)
    def _():
        o_ref[...] = (acc_ref[...] + b_ref[...]).astype(o_ref.dtype)


def linear(x, w, b, *, tm=256, tn=512, tk=512):
    M, K = x.shape
    N = w.shape[1]
    tm = _pick_tile(M, tm, 8)
    tn = _pick_tile(N, tn, 128)
    tk = _pick_tile(K, tk, 128)
    grid = (M // tm, N // tn, K // tk)
    return pl.pallas_call(
        _linear_kernel,
        out_shape=jax.ShapeDtypeStruct((M, N), jnp.float32),
        grid_spec=pltpu.PrefetchScalarGridSpec(
            num_scalar_prefetch=0,
            grid=grid,
            in_specs=[
                pl.BlockSpec((tm, tk), lambda i, j, k: (i, k)),
                pl.BlockSpec((tk, tn), lambda i, j, k: (k, j)),
                pl.BlockSpec((1, tn), lambda i, j, k: (0, j)),
            ],
            out_specs=pl.BlockSpec((tm, tn), lambda i, j, k: (i, j)),
            scratch_shapes=[pltpu.VMEM((tm, tn), jnp.float32)],
        ),
        compiler_params=pltpu.CompilerParams(
            dimension_semantics=("parallel", "parallel", "arbitrary"),
            vmem_limit_bytes=_VMEM_LIMIT,
        ),
    )(x, w, b.reshape(1, N))


# ---------------------------------------------------------------------------
# Linear with fused residual-add + LayerNorm epilogue (attention output proj)
# Output width N is kept whole per block because LN reduces over the last axis.
# ---------------------------------------------------------------------------
def _linear_res_ln_kernel(x_ref, w_ref, b_ref, res_ref, g_ref, beta_ref,
                          o_ref, acc_ref, *, eps):
    @pl.when(pl.program_id(1) == 0)
    def _():
        acc_ref[...] = jnp.zeros_like(acc_ref)

    acc_ref[...] += jnp.dot(x_ref[...].astype(w_ref.dtype), w_ref[...],
                            preferred_element_type=jnp.float32)

    @pl.when(pl.program_id(1) == pl.num_programs(1) - 1)
    def _():
        y = acc_ref[...] + b_ref[...] + res_ref[...]
        o_ref[...] = _layer_norm(y, g_ref[...], beta_ref[...], eps).astype(o_ref.dtype)


def linear_res_ln(x, w, b, res, gamma, beta, *, eps=1e-12, tm=256, tk=512):
    """LayerNorm(x @ w + b + res) — residual + LN fused into the matmul epilogue."""
    M, K = x.shape
    N = w.shape[1]
    tm = _pick_tile(M, tm, 8)
    tk = _pick_tile(K, tk, 128)
    grid = (M // tm, K // tk)
    return pl.pallas_call(
        functools.partial(_linear_res_ln_kernel, eps=eps),
        out_shape=jax.ShapeDtypeStruct((M, N), jnp.float32),
        grid_spec=pltpu.PrefetchScalarGridSpec(
            num_scalar_prefetch=0,
            grid=grid,
            in_specs=[
                pl.BlockSpec((tm, tk), lambda i, k: (i, k)),
                pl.BlockSpec((tk, N), lambda i, k: (k, 0)),
                pl.BlockSpec((1, N), lambda i, k: (0, 0)),
                pl.BlockSpec((tm, N), lambda i, k: (i, 0)),
                pl.BlockSpec((1, N), lambda i, k: (0, 0)),
                pl.BlockSpec((1, N), lambda i, k: (0, 0)),
            ],
            out_specs=pl.BlockSpec((tm, N), lambda i, k: (i, 0)),
            scratch_shapes=[pltpu.VMEM((tm, N), jnp.float32)],
        ),
        compiler_params=pltpu.CompilerParams(
            dimension_semantics=("parallel", "arbitrary"),
            vmem_limit_bytes=_VMEM_LIMIT,
        ),
    )(x, w, b.reshape(1, N), res, gamma.reshape(1, N), beta.reshape(1, N))


# ---------------------------------------------------------------------------
# Fused FFN: LayerNorm(gelu(x@wi + bi) @ wf + bf + x)
# The (tm, inter) intermediate lives only in VMEM/vregs — never hits HBM.
# ---------------------------------------------------------------------------
def _ffn_res_ln_kernel(x_ref, wi_ref, bi_ref, wf_ref, bf_ref, g_ref, beta_ref,
                       o_ref, *, eps):
    x = x_ref[...]
    h = jnp.dot(x.astype(wi_ref.dtype), wi_ref[...],
                preferred_element_type=jnp.float32) + bi_ref[...]
    h = _gelu(h)
    y = jnp.dot(h.astype(wf_ref.dtype), wf_ref[...],
                preferred_element_type=jnp.float32) + bf_ref[...]
    y = y + x
    o_ref[...] = _layer_norm(y, g_ref[...], beta_ref[...], eps).astype(o_ref.dtype)


def ffn_res_ln(x, wi, bi, wf, bf, gamma, beta, *, eps=1e-12, tm=256):
    # At bert-base scale (H=768, inter=3072) keep tm modest (<=256): the
    # (tm, inter) intermediate is compiler-managed VMEM and bf16 weights fit
    # comfortably under the VMEM limit on all generations.
    M, H = x.shape
    inter = wi.shape[1]
    tm = _pick_tile(M, tm, 8)
    grid = (M // tm,)
    return pl.pallas_call(
        functools.partial(_ffn_res_ln_kernel, eps=eps),
        out_shape=jax.ShapeDtypeStruct((M, H), jnp.float32),
        grid=grid,
        in_specs=[
            pl.BlockSpec((tm, H), lambda i: (i, 0)),
            pl.BlockSpec((H, inter), lambda i: (0, 0)),
            pl.BlockSpec((1, inter), lambda i: (0, 0)),
            pl.BlockSpec((inter, H), lambda i: (0, 0)),
            pl.BlockSpec((1, H), lambda i: (0, 0)),
            pl.BlockSpec((1, H), lambda i: (0, 0)),
            pl.BlockSpec((1, H), lambda i: (0, 0)),
        ],
        out_specs=pl.BlockSpec((tm, H), lambda i: (i, 0)),
        compiler_params=pltpu.CompilerParams(
            dimension_semantics=("parallel",),
            vmem_limit_bytes=_VMEM_LIMIT,
        ),
    )(x, wi, bi.reshape(1, inter), wf, bf.reshape(1, H),
      gamma.reshape(1, H), beta.reshape(1, H))


# ---------------------------------------------------------------------------
# LayerNorm without residual (embedding LN) — no zeros tensor round-tripped.
# ---------------------------------------------------------------------------
def _ln_kernel(x_ref, g_ref, b_ref, o_ref, *, eps):
    o_ref[...] = _layer_norm(x_ref[...], g_ref[...], b_ref[...], eps).astype(o_ref.dtype)


def layer_norm(x, gamma, beta, *, eps=1e-12, tm=512):
    M, H = x.shape
    tm = _pick_tile(M, tm, 8)
    return pl.pallas_call(
        functools.partial(_ln_kernel, eps=eps),
        out_shape=jax.ShapeDtypeStruct((M, H), jnp.float32),
        grid=(M // tm,),
        in_specs=[
            pl.BlockSpec((tm, H), lambda i: (i, 0)),
            pl.BlockSpec((1, H), lambda i: (0, 0)),
            pl.BlockSpec((1, H), lambda i: (0, 0)),
        ],
        out_specs=pl.BlockSpec((tm, H), lambda i: (i, 0)),
        compiler_params=pltpu.CompilerParams(
            dimension_semantics=("parallel",),
            vmem_limit_bytes=_VMEM_LIMIT,
        ),
    )(x, gamma.reshape(1, H), beta.reshape(1, H))


# ---------------------------------------------------------------------------
# Attention: one grid step per batch element, heads split/merged in-kernel.
# Input is the fused QKV slab (B, S, 3H); output is written lane-dense (S, H).
# ---------------------------------------------------------------------------
def _attention_kernel(qkv_ref, o_ref, *, num_heads, head_dim, hidden, scale):
    outs = []
    for h in range(num_heads):  # static unroll (num_heads is small)
        q = qkv_ref[0, :, pl.ds(h * head_dim, head_dim)]
        k = qkv_ref[0, :, pl.ds(hidden + h * head_dim, head_dim)]
        v = qkv_ref[0, :, pl.ds(2 * hidden + h * head_dim, head_dim)]
        s = jnp.dot(q, k.T, preferred_element_type=jnp.float32) * scale
        s = s - jnp.max(s, axis=-1, keepdims=True)
        p = jnp.exp(s)
        # Divide -> EUP reciprocal + multiply (frees the VALU slot).
        p = p * pl.reciprocal(jnp.sum(p, axis=-1, keepdims=True), approx=True)
        outs.append(jnp.dot(p, v, preferred_element_type=jnp.float32))
    # Concatenate heads so the store is one lane-dense (S, H) write.
    o_ref[0] = jnp.concatenate(outs, axis=-1).astype(o_ref.dtype)


def attention(qkv, num_heads):
    """qkv: (B, S, 3H). Unmasked scaled dot-product attention, heads in-kernel."""
    B, S, threeH = qkv.shape
    H = threeH // 3
    head_dim = H // num_heads
    scale = 1.0 / math.sqrt(head_dim)
    # TODO(synk): for S >= 2k switch to an online-softmax (flash) form with a
    # KV-block grid axis; the dense (S, S) scores are fine for BERT-scale S<=512.
    return pl.pallas_call(
        functools.partial(_attention_kernel, num_heads=num_heads,
                          head_dim=head_dim, hidden=H, scale=scale),
        out_shape=jax.ShapeDtypeStruct((B, S, H), jnp.float32),
        grid=(B,),
        in_specs=[pl.BlockSpec((1, S, threeH), lambda b: (b, 0, 0))],
        out_specs=pl.BlockSpec((1, S, H), lambda b: (b, 0, 0)),
        compiler_params=pltpu.CompilerParams(
            dimension_semantics=("parallel",),
            vmem_limit_bytes=_VMEM_LIMIT,
        ),
    )(qkv)


# ---------------------------------------------------------------------------
# Parameter init (deterministic, synthetic "bert-base-like" small config)
# ---------------------------------------------------------------------------
def init_params(key, vocab, type_vocab, max_pos, H, num_layers, inter):
    keys = iter(jax.random.split(key, 8 + 8 * num_layers))

    def normal(shape, dtype=jnp.float32):
        return (0.02 * jax.random.normal(next(keys), shape, jnp.float32)).astype(dtype)

    wdt = jnp.bfloat16  # matmul weights in bf16; f32 accumulation in-kernel

    params = {
        "word_emb": normal((vocab, H)),
        "pos_emb": normal((max_pos, H)),
        "type_emb": normal((type_vocab, H)),
        "emb_ln_g": jnp.ones((H,), jnp.float32),
        "emb_ln_b": jnp.zeros((H,), jnp.float32),
        "layers": [],
        "pool_w": normal((H, H)),
        "pool_b": jnp.zeros((H,), jnp.float32),
        "fc_w": normal((H, 2)),
        "fc_b": jnp.zeros((2,), jnp.float32),
    }
    for _ in range(num_layers):
        params["layers"].append({
            # Fused Q|K|V projection: one (H, 3H) matmul instead of three.
            "w_qkv": normal((H, 3 * H), wdt),
            "b_qkv": jnp.zeros((3 * H,), jnp.float32),
            "wo": normal((H, H), wdt), "bo": jnp.zeros((H,), jnp.float32),
            "ln1_g": jnp.ones((H,), jnp.float32), "ln1_b": jnp.zeros((H,), jnp.float32),
            "wi": normal((H, inter), wdt), "bi": jnp.zeros((inter,), jnp.float32),
            "wf": normal((inter, H), wdt), "bf": jnp.zeros((H,), jnp.float32),
            "ln2_g": jnp.ones((H,), jnp.float32), "ln2_b": jnp.zeros((H,), jnp.float32),
        })
    return params


# ---------------------------------------------------------------------------
# Model.forward
# ---------------------------------------------------------------------------
def model_forward(params, input_ids, token_type_ids, num_heads):
    B, S = input_ids.shape
    H = params["word_emb"].shape[1]

    # Embeddings: data-dependent row gathers stay in XLA; LN runs in Pallas.
    emb = (jnp.take(params["word_emb"], input_ids, axis=0)
           + params["pos_emb"][None, :S, :]
           + jnp.take(params["type_emb"], token_type_ids, axis=0))
    x = layer_norm(emb.reshape(B * S, H).astype(jnp.float32),
                   params["emb_ln_g"], params["emb_ln_b"])
    # dropout(p=0.1): identity in eval mode.

    for lyr in params["layers"]:
        # Fused Q|K|V projection (single tiled matmul; x read from HBM once).
        qkv = linear(x, lyr["w_qkv"], lyr["b_qkv"])            # (B*S, 3H)
        # (B*S, 3H) -> (B, S, 3H) is a layout-free reshape (no XLA transpose);
        # heads are split/merged inside the attention kernel.
        ctx = attention(qkv.reshape(B, S, 3 * H), num_heads)   # (B, S, H)
        ctx = ctx.reshape(B * S, H)
        # Output projection with fused residual-add + LayerNorm epilogue.
        x = linear_res_ln(ctx, lyr["wo"], lyr["bo"], x, lyr["ln1_g"], lyr["ln1_b"])
        # Fused FFN (gelu -> second matmul -> residual -> LN); the (M, inter)
        # intermediate never touches HBM.
        x = ffn_res_ln(x, lyr["wi"], lyr["bi"], lyr["wf"], lyr["bf"],
                       lyr["ln2_g"], lyr["ln2_b"])

    last_hidden_state = x.reshape(B, S, H)

    # Pooler + classifier head: tiny (B,H)@(H,H) and N=2 matmuls — plain XLA
    # per perf review (a pallas_call here is launch overhead + masked stores).
    cls = last_hidden_state[:, 0, :]
    pooled = jnp.tanh(cls @ params["pool_w"] + params["pool_b"])
    # dropout(p=0.1): identity in eval mode.
    logits = pooled @ params["fc_w"] + params["fc_b"]

    return {"logits": logits, "last_hidden_state": last_hidden_state}


if __name__ == "__main__":
    # Small config consistent with the module's structure.
    B, S = 2, 8
    VOCAB, TYPE_VOCAB, MAX_POS = 100, 2, 16
    H, NUM_HEADS, NUM_LAYERS, INTER = 32, 4, 2, 64

    key = jax.random.PRNGKey(0)
    k_params, k_ids, k_types = jax.random.split(key, 3)

    params = init_params(k_params, VOCAB, TYPE_VOCAB, MAX_POS, H, NUM_LAYERS, INTER)
    input_ids = jax.random.randint(k_ids, (B, S), 0, VOCAB, dtype=jnp.int32)
    token_type_ids = jax.random.randint(k_types, (B, S), 0, TYPE_VOCAB, dtype=jnp.int32)

    out = model_forward(params, input_ids, token_type_ids, NUM_HEADS)
    jax.block_until_ready(out)

    assert out["logits"].shape == (B, 2)
    assert out["last_hidden_state"].shape == (B, S, H)
    assert bool(jnp.all(jnp.isfinite(out["logits"])))
    print("KERNEL_OK")
</pallas_src>

<mosaic_0001>
module attributes {stable_mosaic.version = 11 : i64} {
  func.func @_ln_kernel(%arg0: i32, %arg1: memref<16x32xf32, #tpu.memory_space<vmem>>, %arg2: memref<1x32xf32, #tpu.memory_space<vmem>>, %arg3: memref<1x32xf32, #tpu.memory_space<vmem>>, %arg4: memref<16x32xf32, #tpu.memory_space<vmem>>) attributes {dimension_semantics = [#tpu.dimension_semantics<parallel>], iteration_bounds = array<i64: 1>, scalar_prefetch = 0 : i64, scratch_operands = 0 : i64, tpu.core_type = #tpu.core_type<tc>, window_params = [{transform_indices = @transform_0, window_bounds = array<i64: 16, 32>}, {pipeline_mode = #tpu.pipeline_mode<synchronous>, transform_indices = @transform_1, window_bounds = array<i64: 1, 32>}, {pipeline_mode = #tpu.pipeline_mode<synchronous>, transform_indices = @transform_2, window_bounds = array<i64: 1, 32>}, {transform_indices = @transform_3, window_bounds = array<i64: 16, 32>}]} {
    %c0 = arith.constant 0 : index
    %c0_0 = arith.constant 0 : index
    %0 = vector.load %arg1[%c0, %c0_0] : memref<16x32xf32, #tpu.memory_space<vmem>>, vector<16x32xf32>
    %c0_1 = arith.constant 0 : index
    %c0_2 = arith.constant 0 : index
    %1 = vector.load %arg2[%c0_1, %c0_2] : memref<1x32xf32, #tpu.memory_space<vmem>>, vector<1x32xf32>
    %c0_3 = arith.constant 0 : index
    %c0_4 = arith.constant 0 : index
    %2 = vector.load %arg3[%c0_3, %c0_4] : memref<1x32xf32, #tpu.memory_space<vmem>>, vector<1x32xf32>
    %cst = arith.constant dense<0.000000e+00> : vector<16xf32>
    %3 = vector.multi_reduction <add>, %0, %cst [1] : vector<16x32xf32> to vector<16xf32>
    %4 = vector.shape_cast %3 : vector<16xf32> to vector<16x1xf32>
    %cst_5 = arith.constant 3.200000e+01 : f32
    %5 = vector.broadcast %cst_5 : f32 to vector<16x1xf32>
    %6 = arith.divf %4, %5 : vector<16x1xf32>
    %7 = vector.broadcast %6 : vector<16x1xf32> to vector<16x32xf32>
    %8 = arith.subf %0, %7 : vector<16x32xf32>
    %9 = arith.mulf %8, %8 : vector<16x32xf32>
    %cst_6 = arith.constant dense<0.000000e+00> : vector<16xf32>
    %10 = vector.multi_reduction <add>, %9, %cst_6 [1] : vector<16x32xf32> to vector<16xf32>
    %11 = vector.shape_cast %10 : vector<16xf32> to vector<16x1xf32>
    %cst_7 = arith.constant 3.200000e+01 : f32
    %12 = vector.broadcast %cst_7 : f32 to vector<16x1xf32>
    %13 = arith.divf %11, %12 : vector<16x1xf32>
    %cst_8 = arith.constant 9.99999996E-13 : f32
    %14 = vector.broadcast %cst_8 : f32 to vector<16x1xf32>
    %15 = arith.addf %13, %14 : vector<16x1xf32>
    %16 = math.rsqrt %15 : vector<16x1xf32>
    %17 = vector.broadcast %16 : vector<16x1xf32> to vector<16x32xf32>
    %18 = arith.mulf %8, %17 : vector<16x32xf32>
    %19 = vector.broadcast %1 : vector<1x32xf32> to vector<16x32xf32>
    %20 = arith.mulf %18, %19 : vector<16x32xf32>
    %21 = vector.broadcast %2 : vector<1x32xf32> to vector<16x32xf32>
    %22 = arith.addf %20, %21 : vector<16x32xf32>
    %c0_9 = arith.constant 0 : index
    %c0_10 = arith.constant 0 : index
    %23 = vector.load %arg4[%c0_9, %c0_10] : memref<16x32xf32, #tpu.memory_space<vmem>>, vector<16x32xf32>
    tpu.vector_store %arg4[%c0_9, %c0_10], %22 {strides = array<i32>} : memref<16x32xf32, #tpu.memory_space<vmem>>, vector<16x32xf32>,
    return
  }
  func.func @transform_0(%arg0: i32) -> (i32, i32) {
    %c0_i32 = arith.constant 0 : i32
    %c0_i32_0 = arith.constant 0 : i32
    return %arg0, %c0_i32 : i32, i32
  }
  func.func @transform_1(%arg0: i32) -> (i32, i32) {
    %c0_i32 = arith.constant 0 : i32
    %c0_i32_0 = arith.constant 0 : i32
    %c0_i32_1 = arith.constant 0 : i32
    return %c0_i32, %c0_i32_0 : i32, i32
  }
  func.func @transform_2(%arg0: i32) -> (i32, i32) {
    %c0_i32 = arith.constant 0 : i32
    %c0_i32_0 = arith.constant 0 : i32
    %c0_i32_1 = arith.constant 0 : i32
    return %c0_i32, %c0_i32_0 : i32, i32
  }
  func.func @transform_3(%arg0: i32) -> (i32, i32) {
    %c0_i32 = arith.constant 0 : i32
    %c0_i32_0 = arith.constant 0 : i32
    return %arg0, %c0_i32 : i32, i32
  }
}

</mosaic_0001>

<llo_original>
// kernel: tpu_custom_call.1
$region0: #{tpu_custom_call.1}
  #allocation0 [shape = 'u32[]', space=smem, size = 0x4, offset = 0x4, fixed_abs, tag = 'smem constant byte address 0x4 - core index']
  #allocation1 [shape = 'u32[144,128]{1,0:T(1,128)}', space=vmem, size = 0x12000, scoped, tag = 'internal scratch']
  %s0 = inlined_call_operand.hbm [shape: f32[16,32], index: 0, kind: input, shape index: {}]
  %s1 = inlined_call_operand.vmem [shape: f32[1,32], index: 1, kind: input, shape index: {}]
  %s2 = inlined_call_operand.vmem [shape: f32[1,32], index: 2, kind: input, shape index: {}]
  %s3 = inlined_call_operand.hbm [shape: f32[16,32], index: 3, kind: output, shape index: {}]
  %s4 = sld [smem:[#allocation0]]
  $region26: #{tpu_custom_call.1} parent=0
    _
  %s6 = ssub.s32 1, %s4
  %s7 = scalar_select 0, %s6, %s4
  $region1: #{tpu_custom_call.1} parent=0
    #allocation2 [shape = 'u8[8192]{0}', space=vmem, size = 0x2000, scoped, tag = 'input window, operand 0, single buffered']
    #allocation3 [shape = 's32[1]{0}', space=sflag, size = 0x4, scoped, tag = 'scoped memory for tpu_custom_call.1']
    #allocation4 [shape = 's32[1]{0}', space=sflag, size = 0x4, scoped, tag = 'scoped memory for tpu_custom_call.1']
    #allocation5 [shape = 'u8[8192]{0}', space=vmem, size = 0x2000, scoped, tag = 'output window, operand 0, single buffered']
    %8 = vsyncpa [#allocation3], 0
    %9 = vsyncpa [#allocation4], 0
    // Predicated region
    $region2: #{tpu_custom_call.1} parent=1 // pred_check
      _
    $region3: #{tpu_custom_call.1} parent=1 // pred_check_branch
      %11 = sbr.rel (0) target = $region5
    $region4: #{tpu_custom_call.1} parent=1 // pred_region
      %s13 = ssub.s32 256, 256
      %14 = vsyncadd [#allocation3], %s13
      %s15 = sshll.u32 [#allocation2], 4
      %s16 = int_to_ptr.vmem [resolvable:$true] %s15
      %21 = dma.hbm_to_vmem [thread:$0]  %s0, 256, %s16, [#allocation3], 128, 128, 8
    $region5: #{tpu_custom_call.1} parent=1 // pred_fallthru
      _
    // Predicated region
    $region6: #{tpu_custom_call.1} parent=1 // pred_check
      _
    $region7: #{tpu_custom_call.1} parent=1 // pred_check_branch
      %23 = sbr.rel (0) target = $region9
    $region8: #{tpu_custom_call.1} parent=1 // pred_region
      _
    $region9: #{tpu_custom_call.1} parent=1 // pred_fallthru
      _
    // Predicated region
    $region10: #{tpu_custom_call.1} parent=1 // pred_check
      _
    $region11: #{tpu_custom_call.1} parent=1 // pred_check_branch
      %25 = sbr.rel (0) target = $region13
    $region12: #{tpu_custom_call.1} parent=1 // pred_region
      _
    $region13: #{tpu_custom_call.1} parent=1 // pred_fallthru
      _
    // Predicated region
    $region14: #{tpu_custom_call.1} parent=1 // pred_check
      _
    $region15: #{tpu_custom_call.1} parent=1 // pred_check_branch
      %27 = sbr.rel (0) target = $region17
    $region16: #{tpu_custom_call.1} parent=1 // pred_region
      %28 = dma.done [#allocation3], 256
    $region17: #{tpu_custom_call.1} parent=1 // pred_fallthru
      _
    %v29 = vld [vmem:[#allocation2] sm:$0xff]
    %v30 = vld [vmem:[#allocation2 + $0x8] sm:$0xff]
    %v31 = vld [vmem:[%s1] sm:$0x1]
    %v32 = vld [vmem:[%s2] sm:$0x1]
    %vm33 = vcmask 261120
    %v34 = vsel %vm33, %v29, 0.0
    %35 = vadd.xlane.f32.xlu0 %v34
    %v36 = vpop.xlane.xlu0 %35
    %v37 = vsel %vm33, %v30, 0.0
    %38 = vadd.xlane.f32.xlu0 %v37
    %v39 = vpop.xlane.xlu0 %38
    %v40 = vrcp.pop 32.0
    %v41 = vmul.f32 %v36, %v40
    %v42 = vmul.f32 %v39, %v40
    %v43 = vsub.f32 %v29, %v41
    %v44 = vsub.f32 %v30, %v42
    %v45 = vmul.f32 %v43, %v43
    %v46 = vmul.f32 %v44, %v44
    %v47 = vsel %vm33, %v45, 0.0
    %48 = vadd.xlane.f32.xlu0 %v47
    %v49 = vpop.xlane.xlu0 %48
    %v50 = vsel %vm33, %v46, 0.0
    %51 = vadd.xlane.f32.xlu0 %v50
    %v52 = vpop.xlane.xlu0 %51
    %v53 = vmul.f32 %v49, %v40
    %v54 = vmul.f32 %v52, %v40
    %v55 = vadd.f32 %v53, 1e-12
    %v56 = vadd.f32 %v54, 1e-12
    %v57 = vrsqrt.pop %v55
    %v58 = vrsqrt.pop %v56
    %v59 = vmul.f32 %v43, %v57
    %v60 = vmul.f32 %v44, %v58
    %v62 = vlaneseq
    %v63 = vshrl.u32 %v62, 7
    %v64 = vsub.s32 0, %v63
    %v65 = vrot.slane %v31, %v64
    %v67 = vmul.f32 %v59, %v65
    %v68 = vmul.f32 %v60, %v65
    %v70 = vlaneseq
    %v71 = vshrl.u32 %v70, 7
    %v72 = vsub.s32 0, %v71
    %v73 = vrot.slane %v32, %v72
    %v75 = vadd.f32 %v67, %v73
    %v76 = vadd.f32 %v68, %v73
    %77 = vst.msk [vmem:[#allocation5] sm:$0xff] %vm33, %v75
    %78 = vst.msk [vmem:[#allocation5 + $0x8] sm:$0xff] %vm33, %v76
    // Predicated region
    $region18: #{tpu_custom_call.1} parent=1 // pred_check
      _
    $region19: #{tpu_custom_call.1} parent=1 // pred_check_branch
      %80 = sbr.rel (0) target = $region21
    $region20: #{tpu_custom_call.1} parent=1 // pred_region
      %s82 = ssub.s32 256, 256
      %83 = vsyncadd [#allocation4], %s82
      %s84 = sshll.u32 [#allocation5], 4
      %s85 = int_to_ptr.vmem [resolvable:$true] %s84
      %90 = dma.vmem_to_hbm [thread:$0]  %s85, 256, %s3, [#allocation4], 128, 128, 8
    $region21: #{tpu_custom_call.1} parent=1 // pred_fallthru
      _
    // Predicated region
    $region22: #{tpu_custom_call.1} parent=1 // pred_check
      _
    $region23: #{tpu_custom_call.1} parent=1 // pred_check_branch
      %92 = sbr.rel (0) target = $region25
    $region24: #{tpu_custom_call.1} parent=1 // pred_region
      %93 = dma.done [#allocation4], 256
    $region25: #{tpu_custom_call.1} parent=1 // pred_fallthru
      _
    %94 = vsyncpa [#allocation3], 1
    %95 = vsyncpa [#allocation4], 1

</llo_original>
